<compile_context>
chip_gen: v7x
topology: tpu7x:2x2x1
jax: 0.10.0
libtpu: 0.0.40
codegen_flags: <defaults>
</compile_context>

<pallas_src>
import jax
import jax.numpy as jnp
from jax.experimental import pallas as pl
from jax.experimental.pallas import tpu as pltpu

BATCH = 8   # example batch size (any batch works)
FEAT = 2    # Linear(2, 2) -> feature dim is 2


def _fused_loss_kernel(x_ref, w0_ref, w1_ref, w2_ref, o_ref):
    """Whole forward in one kernel.

    x_ref:  (BATCH, FEAT) f32 in VMEM
    w*_ref: (FEAT, FEAT)  f32 in SMEM (PyTorch Linear layout [out, in])
    o_ref:  (1, 1)        f32 in SMEM (scalar loss)
    """
    # ---- parameter folding on the scalar unit (SMEM reads, 10 flops) ----
    # c[j] = sum_o (W1 + W2)[o, j]
    c0 = (w1_ref[0, 0] + w2_ref[0, 0]) + (w1_ref[1, 0] + w2_ref[1, 0])
    c1 = (w1_ref[0, 1] + w2_ref[0, 1]) + (w1_ref[1, 1] + w2_ref[1, 1])
    # d[i] = sum_j W0[j, i] * c[j]
    d0 = w0_ref[0, 0] * c0 + w0_ref[1, 0] * c1
    d1 = w0_ref[0, 1] * c0 + w0_ref[1, 1] * c1

    # ---- batch reduction on the VPU (no MXU, no transposes) ----
    x = x_ref[...]                       # (BATCH, FEAT) f32
    sx0 = jnp.sum(x[:, 0:1])             # sum_b x[b, 0]
    sx1 = jnp.sum(x[:, 1:2])             # sum_b x[b, 1]

    o_ref[0, 0] = sx0 * d0 + sx1 * d1    # scalar loss -> SMEM (no masked VMEM vst)


def model_forward(x, w0, w1, w2):
    """x: (B, 2) f32; w*: (2, 2) f32 in PyTorch Linear layout [out, in]."""
    loss = pl.pallas_call(
        _fused_loss_kernel,
        out_shape=jax.ShapeDtypeStruct((1, 1), jnp.float32),
        in_specs=[
            pl.BlockSpec(memory_space=pltpu.MemorySpace.VMEM),   # x, full (B, 2)
            pl.BlockSpec(memory_space=pltpu.MemorySpace.SMEM),   # w0 (2, 2)
            pl.BlockSpec(memory_space=pltpu.MemorySpace.SMEM),   # w1 (2, 2)
            pl.BlockSpec(memory_space=pltpu.MemorySpace.SMEM),   # w2 (2, 2)
        ],
        out_specs=pl.BlockSpec(memory_space=pltpu.MemorySpace.SMEM),
    )(
        x.astype(jnp.float32),
        w0.astype(jnp.float32),
        w1.astype(jnp.float32),
        w2.astype(jnp.float32),
    )
    return loss[0, 0]


def _reference(x, w0, w1, w2):
    y = x @ w0.T
    return jnp.sum(y @ w1.T + y @ w2.T)


if __name__ == "__main__":
    key = jax.random.PRNGKey(0)
    kx, k0, k1, k2 = jax.random.split(key, 4)
    x = jax.random.normal(kx, (BATCH, FEAT), dtype=jnp.float32)
    # Deterministic synthetic parameters with nn.Linear(2, 2) shapes [out, in].
    w0 = jax.random.normal(k0, (FEAT, FEAT), dtype=jnp.float32) * 0.5
    w1 = jax.random.normal(k1, (FEAT, FEAT), dtype=jnp.float32) * 0.5
    w2 = jax.random.normal(k2, (FEAT, FEAT), dtype=jnp.float32) * 0.5

    fwd = jax.jit(model_forward)
    loss = jax.block_until_ready(fwd(x, w0, w1, w2))
    ref = _reference(x, w0, w1, w2)
    assert jnp.allclose(loss, ref, rtol=1e-5, atol=1e-5), (loss, ref)
    print("KERNEL_OK")
</pallas_src>

<mosaic_0001>
module attributes {stable_mosaic.version = 11 : i64} {
  func.func @_fused_loss_kernel(%arg0: memref<8x2xf32, #tpu.memory_space<vmem>>, %arg1: memref<2x2xf32, #tpu.memory_space<smem>>, %arg2: memref<2x2xf32, #tpu.memory_space<smem>>, %arg3: memref<2x2xf32, #tpu.memory_space<smem>>, %arg4: memref<1x1xf32, #tpu.memory_space<smem>>) attributes {dimension_semantics = [], scalar_prefetch = 0 : i64, scratch_operands = 0 : i64, tpu.core_type = #tpu.core_type<tc>} {
    %c0 = arith.constant 0 : index
    %c0_0 = arith.constant 0 : index
    %0 = memref.load %arg2[%c0, %c0_0] : memref<2x2xf32, #tpu.memory_space<smem>>
    %c0_1 = arith.constant 0 : index
    %c0_2 = arith.constant 0 : index
    %1 = memref.load %arg3[%c0_1, %c0_2] : memref<2x2xf32, #tpu.memory_space<smem>>
    %2 = arith.addf %0, %1 : f32
    %c1 = arith.constant 1 : index
    %c0_3 = arith.constant 0 : index
    %3 = memref.load %arg2[%c1, %c0_3] : memref<2x2xf32, #tpu.memory_space<smem>>
    %c1_4 = arith.constant 1 : index
    %c0_5 = arith.constant 0 : index
    %4 = memref.load %arg3[%c1_4, %c0_5] : memref<2x2xf32, #tpu.memory_space<smem>>
    %5 = arith.addf %3, %4 : f32
    %6 = arith.addf %2, %5 : f32
    %c0_6 = arith.constant 0 : index
    %c1_7 = arith.constant 1 : index
    %7 = memref.load %arg2[%c0_6, %c1_7] : memref<2x2xf32, #tpu.memory_space<smem>>
    %c0_8 = arith.constant 0 : index
    %c1_9 = arith.constant 1 : index
    %8 = memref.load %arg3[%c0_8, %c1_9] : memref<2x2xf32, #tpu.memory_space<smem>>
    %9 = arith.addf %7, %8 : f32
    %c1_10 = arith.constant 1 : index
    %c1_11 = arith.constant 1 : index
    %10 = memref.load %arg2[%c1_10, %c1_11] : memref<2x2xf32, #tpu.memory_space<smem>>
    %c1_12 = arith.constant 1 : index
    %c1_13 = arith.constant 1 : index
    %11 = memref.load %arg3[%c1_12, %c1_13] : memref<2x2xf32, #tpu.memory_space<smem>>
    %12 = arith.addf %10, %11 : f32
    %13 = arith.addf %9, %12 : f32
    %c0_14 = arith.constant 0 : index
    %c0_15 = arith.constant 0 : index
    %14 = memref.load %arg1[%c0_14, %c0_15] : memref<2x2xf32, #tpu.memory_space<smem>>
    %15 = arith.mulf %14, %6 : f32
    %c1_16 = arith.constant 1 : index
    %c0_17 = arith.constant 0 : index
    %16 = memref.load %arg1[%c1_16, %c0_17] : memref<2x2xf32, #tpu.memory_space<smem>>
    %17 = arith.mulf %16, %13 : f32
    %18 = arith.addf %15, %17 : f32
    %c0_18 = arith.constant 0 : index
    %c1_19 = arith.constant 1 : index
    %19 = memref.load %arg1[%c0_18, %c1_19] : memref<2x2xf32, #tpu.memory_space<smem>>
    %20 = arith.mulf %19, %6 : f32
    %c1_20 = arith.constant 1 : index
    %c1_21 = arith.constant 1 : index
    %21 = memref.load %arg1[%c1_20, %c1_21] : memref<2x2xf32, #tpu.memory_space<smem>>
    %22 = arith.mulf %21, %13 : f32
    %23 = arith.addf %20, %22 : f32
    %c0_22 = arith.constant 0 : index
    %c0_23 = arith.constant 0 : index
    %24 = vector.load %arg0[%c0_22, %c0_23] : memref<8x2xf32, #tpu.memory_space<vmem>>, vector<8x2xf32>
    %25 = vector.extract_strided_slice %24 {offsets = [0, 0], sizes = [8, 1], strides = [1, 1]} : vector<8x2xf32> to vector<8x1xf32>
    %26 = vector.shape_cast %25 : vector<8x1xf32> to vector<1x8x1xf32>
    %cst = arith.constant dense<0.000000e+00> : vector<1xf32>
    %27 = vector.multi_reduction <add>, %26, %cst [1, 2] : vector<1x8x1xf32> to vector<1xf32>
    %28 = vector.shape_cast %27 : vector<1xf32> to vector<1x1x1xf32>
    %29 = vector.extract %28[0, 0, 0] : f32 from vector<1x1x1xf32>
    %30 = vector.extract_strided_slice %24 {offsets = [0, 1], sizes = [8, 1], strides = [1, 1]} : vector<8x2xf32> to vector<8x1xf32>
    %31 = vector.shape_cast %30 : vector<8x1xf32> to vector<1x8x1xf32>
    %cst_24 = arith.constant dense<0.000000e+00> : vector<1xf32>
    %32 = vector.multi_reduction <add>, %31, %cst_24 [1, 2] : vector<1x8x1xf32> to vector<1xf32>
    %33 = vector.shape_cast %32 : vector<1xf32> to vector<1x1x1xf32>
    %34 = vector.extract %33[0, 0, 0] : f32 from vector<1x1x1xf32>
    %35 = arith.mulf %29, %18 : f32
    %36 = arith.mulf %34, %23 : f32
    %37 = arith.addf %35, %36 : f32
    %c0_25 = arith.constant 0 : index
    %c0_26 = arith.constant 0 : index
    %38 = memref.load %arg4[%c0_25, %c0_26] : memref<1x1xf32, #tpu.memory_space<smem>>
    memref.store %37, %arg4[%c0_25, %c0_26] : memref<1x1xf32, #tpu.memory_space<smem>>
    return
  }
}

</mosaic_0001>

<llo_original>
// kernel: model_forward.1
$region0: #{model_forward.1}
  #allocation0 [shape = 'u32[]', space=smem, size = 0x4, offset = 0x4, fixed_abs, tag = 'smem constant byte address 0x4 - core index']
  #allocation1 [shape = 'u32[144,128]{1,0:T(1,128)}', space=vmem, size = 0x12000, scoped, tag = 'internal scratch']
  %s0 = inlined_call_operand.vmem [shape: f32[8,2], index: 0, kind: input, shape index: {}]
  %s1 = inlined_call_operand.vmem [shape: f32[2,2], index: 1, kind: input, shape index: {}]
  %s2 = inlined_call_operand.vmem [shape: f32[2,2], index: 2, kind: input, shape index: {}]
  %s3 = inlined_call_operand.vmem [shape: f32[2,2], index: 3, kind: input, shape index: {}]
  %s4 = inlined_call_operand.hbm [shape: f32[1,1], index: 4, kind: output, shape index: {}]
  %s5 = sld [smem:[#allocation0]]
  $region38: #{model_forward.1} parent=0
    _
  %s7 = ssub.s32 1, %s5
  %s8 = scalar_select 0, %s7, %s5
  $region1: #{model_forward.1} parent=0
    #allocation2 [shape = 'u8[1024]{0}', space=smem, size = 0x400, scoped, tag = 'input window, operand 1, single buffered']
    #allocation3 [shape = 's32[1]{0}', space=sflag, size = 0x4, scoped, tag = 'scoped memory for model_forward.1']
    #allocation4 [shape = 's32[1]{0}', space=sflag, size = 0x4, scoped, tag = 'scoped memory for model_forward.1']
    #allocation5 [shape = 'u8[1024]{0}', space=smem, size = 0x400, scoped, tag = 'input window, operand 2, single buffered']
    #allocation6 [shape = 's32[1]{0}', space=sflag, size = 0x4, scoped, tag = 'scoped memory for model_forward.1']
    #allocation7 [shape = 'u8[1024]{0}', space=smem, size = 0x400, scoped, tag = 'input window, operand 3, single buffered']
    #allocation8 [shape = 'u8[512]{0}', space=smem, size = 0x200, scoped, tag = 'output window, operand 0, single buffered']
    %9 = vsyncpa [#allocation4], 0
    %10 = vsyncpa [#allocation6], 0
    %11 = vsyncpa [#allocation3], 0
    // Predicated region
    $region2: #{model_forward.1} parent=1 // pred_check
      _
    $region3: #{model_forward.1} parent=1 // pred_check_branch
      %13 = sbr.rel (0) target = $region5
    $region4: #{model_forward.1} parent=1 // pred_region
      _
    $region5: #{model_forward.1} parent=1 // pred_fallthru
      _
    // Predicated region
    $region6: #{model_forward.1} parent=1 // pred_check
      _
    $region7: #{model_forward.1} parent=1 // pred_check_branch
      %15 = sbr.rel (0) target = $region9
    $region8: #{model_forward.1} parent=1 // pred_region
      %s17 = ssub.s32 32, 32
      %18 = vsyncadd [#allocation4], %s17
      %s20 = sshll.u32 %s1, 4
      %s21 = int_to_ptr.vmem [resolvable:$true] %s20
      %23 = dma.vmem_to_smem %s21, 32, [#allocation2], [#allocation4]
    $region9: #{model_forward.1} parent=1 // pred_fallthru
      _
    // Predicated region
    $region10: #{model_forward.1} parent=1 // pred_check
      _
    $region11: #{model_forward.1} parent=1 // pred_check_branch
      %25 = sbr.rel (0) target = $region13
    $region12: #{model_forward.1} parent=1 // pred_region
      %s27 = ssub.s32 32, 32
      %28 = vsyncadd [#allocation6], %s27
      %s30 = sshll.u32 %s2, 4
      %s31 = int_to_ptr.vmem [resolvable:$true] %s30
      %33 = dma.vmem_to_smem %s31, 32, [#allocation5], [#allocation6]
    $region13: #{model_forward.1} parent=1 // pred_fallthru
      _
    // Predicated region
    $region14: #{model_forward.1} parent=1 // pred_check
      _
    $region15: #{model_forward.1} parent=1 // pred_check_branch
      %35 = sbr.rel (0) target = $region17
    $region16: #{model_forward.1} parent=1 // pred_region
      %s37 = ssub.s32 32, 32
      %38 = vsyncadd [#allocation6], %s37
      %s40 = sshll.u32 %s3, 4
      %s41 = int_to_ptr.vmem [resolvable:$true] %s40
      %43 = dma.vmem_to_smem %s41, 32, [#allocation7], [#allocation6]
    $region17: #{model_forward.1} parent=1 // pred_fallthru
      _
    // Predicated region
    $region18: #{model_forward.1} parent=1 // pred_check
      _
    $region19: #{model_forward.1} parent=1 // pred_check_branch
      %45 = sbr.rel (0) target = $region21
    $region20: #{model_forward.1} parent=1 // pred_region
      %46 = dma.done [#allocation4], 32
    $region21: #{model_forward.1} parent=1 // pred_fallthru
      _
    // Predicated region
    $region22: #{model_forward.1} parent=1 // pred_check
      _
    $region23: #{model_forward.1} parent=1 // pred_check_branch
      %48 = sbr.rel (0) target = $region25
    $region24: #{model_forward.1} parent=1 // pred_region
      %49 = dma.done [#allocation6], 32
    $region25: #{model_forward.1} parent=1 // pred_fallthru
      _
    // Predicated region
    $region26: #{model_forward.1} parent=1 // pred_check
      _
    $region27: #{model_forward.1} parent=1 // pred_check_branch
      %51 = sbr.rel (0) target = $region29
    $region28: #{model_forward.1} parent=1 // pred_region
      %52 = dma.done [#allocation6], 32
    $region29: #{model_forward.1} parent=1 // pred_fallthru
      _
    %53 = sfence
    %s54 = sld [smem:[#allocation5]]
    %s55 = sld [smem:[#allocation7]]
    %s56 = sadd.f32 %s54, %s55
    %s57 = sld [smem:[#allocation5 + $0x80]]
    %s58 = sld [smem:[#allocation7 + $0x80]]
    %s59 = sadd.f32 %s57, %s58
    %s60 = sadd.f32 %s56, %s59
    %s61 = sld [smem:[#allocation5 + $0x1]]
    %s62 = sld [smem:[#allocation7 + $0x1]]
    %s63 = sadd.f32 %s61, %s62
    %s64 = sld [smem:[#allocation5 + $0x81]]
    %s65 = sld [smem:[#allocation7 + $0x81]]
    %s66 = sadd.f32 %s64, %s65
    %s67 = sadd.f32 %s63, %s66
    %s68 = sld [smem:[#allocation2]]
    %s69 = smul.f32 %s68, %s60
    %s70 = sld [smem:[#allocation2 + $0x80]]
    %s71 = smul.f32 %s70, %s67
    %s72 = sadd.f32 %s69, %s71
    %s73 = sld [smem:[#allocation2 + $0x1]]
    %s74 = smul.f32 %s73, %s60
    %s75 = sld [smem:[#allocation2 + $0x81]]
    %s76 = smul.f32 %s75, %s67
    %s77 = sadd.f32 %s74, %s76
    %v78 = vld [vmem:[%s0] sm:$0xff]
    %vm79 = vcmask 7168
    %v80 = vsel %vm79, %v78, 0.0
    %81 = vadd.xlane.f32.xlu0 %v80
    %v82 = vpop.xlane.xlu0 %81
    %v83 = vrot.slane %v82, 4
    %v84 = vadd.f32 %v82, %v83
    %v85 = vrot.slane %v84, 2
    %v86 = vadd.f32 %v84, %v85
    %v87 = vrot.slane %v86, 1
    %v88 = vadd.f32 %v86, %v87
    %s89 = vtos %v88
    %91 = vrot.lane.b32.xlu0 %v78, 127
    %v92 = vpop.permute.xlu0 %91
    %v94 = vsel %vm79, %v92, 0.0
    %95 = vadd.xlane.f32.xlu0 %v94
    %v96 = vpop.xlane.xlu0 %95
    %v97 = vrot.slane %v96, 4
    %v98 = vadd.f32 %v96, %v97
    %v99 = vrot.slane %v98, 2
    %v100 = vadd.f32 %v98, %v99
    %v101 = vrot.slane %v100, 1
    %v102 = vadd.f32 %v100, %v101
    %s103 = vtos %v102
    %s104 = smul.f32 %s89, %s72
    %s105 = smul.f32 %s103, %s77
    %s106 = sadd.f32 %s104, %s105
    %s107 = scalar_lea.smem [#allocation8], 0
    %108 = sst [smem:[%s107]] %s106
    // Predicated region
    $region30: #{model_forward.1} parent=1 // pred_check
      _
    $region31: #{model_forward.1} parent=1 // pred_check_branch
      %110 = sbr.rel (0) target = $region33
    $region32: #{model_forward.1} parent=1 // pred_region
      %s112 = ssub.s32 16, 16
      %113 = vsyncadd [#allocation3], %s112
      %116 = dma.smem_to_hbm [#allocation8], 16, %s4, [#allocation3]
    $region33: #{model_forward.1} parent=1 // pred_fallthru
      _
    // Predicated region
    $region34: #{model_forward.1} parent=1 // pred_check
      _
    $region35: #{model_forward.1} parent=1 // pred_check_branch
      %118 = sbr.rel (0) target = $region37
    $region36: #{model_forward.1} parent=1 // pred_region
      %119 = dma.done [#allocation3], 16
    $region37: #{model_forward.1} parent=1 // pred_fallthru
      _
    %120 = sfence
    %121 = vsyncpa [#allocation3], 1
    %122 = vsyncpa [#allocation4], 1
    %123 = vsyncpa [#allocation6], 1

</llo_original>
